<compile_context>
chip_gen: v5e
topology: v5e:2x2
jax: 0.10.0
libtpu: 0.0.40
codegen_flags: <defaults>
</compile_context>

<pallas_src>
import jax
import jax.numpy as jnp
import numpy as np
from jax import lax
from jax.experimental import pallas as pl
from jax.experimental.pallas import tpu as pltpu

B = 2
CIN, COUT = 1, 16
KS = 5                         # conv kernel size
PAD = 4
H = W = 28
CH = CW = H + 2 * PAD - KS + 1  # 32 (conv output spatial)
PH = PW = CH // 2               # 16 (after 2x2 max-pool)
PHW = PH * PW                   # 256
FLAT = COUT * PHW               # 4096
NCLS = 10
KP_SIDE = KS + 1                # 6: a 6x6 stride-2 patch covers one 2x2 pool window
KPATCH = KP_SIDE * KP_SIDE      # 36
NOFF = 4                        # the four 2x2 pool-window offsets


def mnist_fused_kernel(p_ref, w4_ref, bc_ref, wf_ref, bf_ref, o_ref):
    # p_ref : (B*PHW, KPATCH)  6x6/stride-2 patches, rows ordered (b, ph, pw)
    # w4_ref: (4*COUT, KPATCH) conv weight expanded over the 4 pool offsets
    # bc_ref: (COUT, 1)        conv bias
    # wf_ref: (NCLS, FLAT)     FC weight, untouched PyTorch layout (n, c*256+s)
    # bf_ref: (NCLS, 1)        FC bias
    # o_ref : (NCLS, B)        logits^T
    nb = o_ref.shape[1]

    # Conv for all four pool offsets at once: (64, 36) x (B*256, 36)^T
    # -> lane-dense (64, B*256).  Contraction over the 36 patch taps.
    s = lax.dot_general(w4_ref[...], p_ref[...],
                        dimension_numbers=(((1,), (1,)), ((), ())),
                        preferred_element_type=jnp.float32)

    # 2x2 max-pool = tree-max over the four offset row blocks (rows are
    # grouped (offset, channel); 16-row blocks are sublane-tile aligned).
    pooled = jnp.maximum(jnp.maximum(s[0:COUT, :], s[COUT:2 * COUT, :]),
                         jnp.maximum(s[2 * COUT:3 * COUT, :], s[3 * COUT:4 * COUT, :]))
    # Per-channel bias + ReLU commute with the max -> apply once after pooling.
    pooled = jnp.maximum(pooled + bc_ref[...], 0.0)           # (COUT, B*PHW)

    # Fully-connected layer: logits[n, b] = sum_{c,s} wf[n, c*256+s] *
    # pooled[c, b*256+s].  Contract the channel dim with a short unrolled VPU
    # loop over small (10, 256) tiles (no big broadcast intermediate), then a
    # single lane-reduce per batch.
    accs = [jnp.zeros((NCLS, PHW), jnp.float32) for _ in range(nb)]
    for c in range(COUT):
        wf_c = wf_ref[:, c * PHW:(c + 1) * PHW]               # (10, 256), aligned
        row = pooled[c:c + 1, :]                              # (1, B*PHW)
        for b in range(nb):
            accs[b] = accs[b] + wf_c * row[:, b * PHW:(b + 1) * PHW]

    # Assemble the full (NCLS, B) logits block and store it ONCE.
    col = lax.broadcasted_iota(jnp.int32, (NCLS, nb), 1)
    logits = sum(jnp.where(col == b,
                           jnp.sum(accs[b], axis=1, keepdims=True), 0.0)
                 for b in range(nb))
    o_ref[...] = logits + bf_ref[...]


def mnist_cnn_forward(x, w_conv, b_conv, w_fc, b_fc):
    # x: (B, 1, 28, 28) float32, NCHW like PyTorch.
    bsz = x.shape[0]
    assert CIN == 1  # weight expansion below assumes a single input channel

    # One XLA op: 6x6 patches at stride 2 over the 4-padded input.  Each patch
    # holds every input tap needed by one 2x2 pool window of conv outputs.
    # NHWC output -> the reshape below is a free leading-dim bitcast.
    patches = lax.conv_general_dilated_patches(
        x, filter_shape=(KP_SIDE, KP_SIDE), window_strides=(2, 2),
        padding=((PAD, PAD), (PAD, PAD)),
        dimension_numbers=('NCHW', 'OIHW', 'NHWC'))           # (B, 16, 16, 36)
    p = patches.reshape(bsz * PHW, KPATCH)                    # (B*256, 36)

    # Pool-offset-expanded conv weight (tiny, built from the 2 KiB weight):
    # W4[(di,dj,c), u, v] = w[c, u-di, v-dj]  (zero outside the 5x5 support).
    w = w_conv.reshape(COUT, KS, KS)
    w4 = jnp.stack([jnp.pad(w, ((0, 0), (di, 1 - di), (dj, 1 - dj)))
                    for di in (0, 1) for dj in (0, 1)], axis=0)   # (4, 16, 6, 6)
    w4 = w4.reshape(NOFF * COUT, KPATCH)                          # (64, 36)

    bc = b_conv.reshape(COUT, 1)
    bf = b_fc.reshape(NCLS, 1)

    out_t = pl.pallas_call(
        mnist_fused_kernel,
        out_shape=jax.ShapeDtypeStruct((NCLS, bsz), jnp.float32),
        # No grid: single invocation, full-array VMEM blocks, no pipeline /
        # double-buffering overhead.
        in_specs=[
            pl.BlockSpec(memory_space=pltpu.MemorySpace.VMEM),  # patches
            pl.BlockSpec(memory_space=pltpu.MemorySpace.VMEM),  # w4
            pl.BlockSpec(memory_space=pltpu.MemorySpace.VMEM),  # conv bias
            pl.BlockSpec(memory_space=pltpu.MemorySpace.VMEM),  # fc weight
            pl.BlockSpec(memory_space=pltpu.MemorySpace.VMEM),  # fc bias
        ],
        out_specs=pl.BlockSpec(memory_space=pltpu.MemorySpace.VMEM),
    )(p, w4, bc, w_fc, bf)
    return out_t.T                                            # (B, 10)


def reference_forward(x, w_conv, b_conv, w_fc, b_fc):
    # Pure-JAX reference mirroring the PyTorch forward.
    out = lax.conv_general_dilated(
        x, w_conv, window_strides=(1, 1), padding=((PAD, PAD), (PAD, PAD)),
        dimension_numbers=('NCHW', 'OIHW', 'NCHW'))
    out = out + b_conv[None, :, None, None]
    out = jnp.maximum(out, 0.0)
    out = lax.reduce_window(out, -jnp.inf, lax.max,
                            (1, 1, 2, 2), (1, 1, 2, 2), 'VALID')
    out = out.reshape(x.shape[0], -1)
    return out @ w_fc.T + b_fc


if __name__ == "__main__":
    key = jax.random.PRNGKey(0)
    k1, k2, k3, k4, k5 = jax.random.split(key, 5)
    # Deterministic synthetic parameters (PyTorch shapes).
    w_conv = jax.random.normal(k1, (COUT, CIN, KS, KS), jnp.float32) * 0.1
    b_conv = jax.random.normal(k2, (COUT,), jnp.float32) * 0.1
    w_fc = jax.random.normal(k3, (NCLS, FLAT), jnp.float32) * 0.02
    b_fc = jax.random.normal(k4, (NCLS,), jnp.float32) * 0.02
    # MNIST-shaped input; fc1 (4096 -> 10) pins spatial size to 28x28, C=1.
    x = jax.random.normal(k5, (B, CIN, H, W), jnp.float32)

    out = jax.jit(mnist_cnn_forward)(x, w_conv, b_conv, w_fc, b_fc)
    out = jax.block_until_ready(out)

    ref = reference_forward(x, w_conv, b_conv, w_fc, b_fc)
    assert out.shape == (B, NCLS)
    np.testing.assert_allclose(np.asarray(out), np.asarray(ref),
                               rtol=1e-3, atol=1e-3)
    print("KERNEL_OK")
</pallas_src>

<mosaic_0001>
module attributes {stable_mosaic.version = 11 : i64} {
  func.func @mnist_fused_kernel(%arg0: memref<512x36xf32, #tpu.memory_space<vmem>>, %arg1: memref<64x36xf32, #tpu.memory_space<vmem>>, %arg2: memref<16x1xf32, #tpu.memory_space<vmem>>, %arg3: memref<10x4096xf32, #tpu.memory_space<vmem>>, %arg4: memref<10x1xf32, #tpu.memory_space<vmem>>, %arg5: memref<10x2xf32, #tpu.memory_space<vmem>>) attributes {dimension_semantics = [], scalar_prefetch = 0 : i64, scratch_operands = 0 : i64, tpu.core_type = #tpu.core_type<tc>} {
    %c0 = arith.constant 0 : index
    %c0_0 = arith.constant 0 : index
    %0 = vector.load %arg1[%c0, %c0_0] : memref<64x36xf32, #tpu.memory_space<vmem>>, vector<64x36xf32>
    %c0_1 = arith.constant 0 : index
    %c0_2 = arith.constant 0 : index
    %1 = vector.load %arg0[%c0_1, %c0_2] : memref<512x36xf32, #tpu.memory_space<vmem>>, vector<512x36xf32>
    %cst = arith.constant dense<0.000000e+00> : vector<64x512xf32>
    %2 = tpu.matmul %0, %1, %cst {dimension_numbers = #tpu.dot_dimension_numbers<[1], [1], [0], [0], [0, 0, 1, 0], [], []>} : vector<64x36xf32>, vector<512x36xf32>, vector<64x512xf32> -> vector<64x512xf32>
    %3 = vector.extract_strided_slice %2 {offsets = [0, 0], sizes = [16, 512], strides = [1, 1]} : vector<64x512xf32> to vector<16x512xf32>
    %4 = vector.extract_strided_slice %2 {offsets = [16, 0], sizes = [16, 512], strides = [1, 1]} : vector<64x512xf32> to vector<16x512xf32>
    %5 = arith.maximumf %3, %4 : vector<16x512xf32>
    %6 = vector.extract_strided_slice %2 {offsets = [32, 0], sizes = [16, 512], strides = [1, 1]} : vector<64x512xf32> to vector<16x512xf32>
    %7 = vector.extract_strided_slice %2 {offsets = [48, 0], sizes = [16, 512], strides = [1, 1]} : vector<64x512xf32> to vector<16x512xf32>
    %8 = arith.maximumf %6, %7 : vector<16x512xf32>
    %9 = arith.maximumf %5, %8 : vector<16x512xf32>
    %c0_3 = arith.constant 0 : index
    %c0_4 = arith.constant 0 : index
    %10 = vector.load %arg2[%c0_3, %c0_4] : memref<16x1xf32, #tpu.memory_space<vmem>>, vector<16x1xf32>
    %11 = vector.broadcast %10 : vector<16x1xf32> to vector<16x512xf32>
    %12 = arith.addf %9, %11 : vector<16x512xf32>
    %cst_5 = arith.constant 0.000000e+00 : f32
    %13 = vector.broadcast %cst_5 : f32 to vector<16x512xf32>
    %14 = arith.maximumf %12, %13 : vector<16x512xf32>
    %cst_6 = arith.constant 0.000000e+00 : f32
    %15 = vector.broadcast %cst_6 : f32 to vector<10x256xf32>
    %cst_7 = arith.constant 0.000000e+00 : f32
    %16 = vector.broadcast %cst_7 : f32 to vector<10x256xf32>
    %c0_8 = arith.constant 0 : index
    %c0_9 = arith.constant 0 : index
    %17 = vector.load %arg3[%c0_8, %c0_9] : memref<10x4096xf32, #tpu.memory_space<vmem>>, vector<10x256xf32>
    %18 = vector.extract_strided_slice %14 {offsets = [0, 0], sizes = [1, 512], strides = [1, 1]} : vector<16x512xf32> to vector<1x512xf32>
    %19 = vector.extract_strided_slice %18 {offsets = [0, 0], sizes = [1, 256], strides = [1, 1]} : vector<1x512xf32> to vector<1x256xf32>
    %20 = vector.broadcast %19 : vector<1x256xf32> to vector<10x256xf32>
    %21 = arith.mulf %17, %20 : vector<10x256xf32>
    %22 = arith.addf %15, %21 : vector<10x256xf32>
    %23 = vector.extract_strided_slice %18 {offsets = [0, 256], sizes = [1, 256], strides = [1, 1]} : vector<1x512xf32> to vector<1x256xf32>
    %24 = vector.broadcast %23 : vector<1x256xf32> to vector<10x256xf32>
    %25 = arith.mulf %17, %24 : vector<10x256xf32>
    %26 = arith.addf %16, %25 : vector<10x256xf32>
    %c0_10 = arith.constant 0 : index
    %c256 = arith.constant 256 : index
    %27 = vector.load %arg3[%c0_10, %c256] : memref<10x4096xf32, #tpu.memory_space<vmem>>, vector<10x256xf32>
    %28 = vector.extract_strided_slice %14 {offsets = [1, 0], sizes = [1, 512], strides = [1, 1]} : vector<16x512xf32> to vector<1x512xf32>
    %29 = vector.extract_strided_slice %28 {offsets = [0, 0], sizes = [1, 256], strides = [1, 1]} : vector<1x512xf32> to vector<1x256xf32>
    %30 = vector.broadcast %29 : vector<1x256xf32> to vector<10x256xf32>
    %31 = arith.mulf %27, %30 : vector<10x256xf32>
    %32 = arith.addf %22, %31 : vector<10x256xf32>
    %33 = vector.extract_strided_slice %28 {offsets = [0, 256], sizes = [1, 256], strides = [1, 1]} : vector<1x512xf32> to vector<1x256xf32>
    %34 = vector.broadcast %33 : vector<1x256xf32> to vector<10x256xf32>
    %35 = arith.mulf %27, %34 : vector<10x256xf32>
    %36 = arith.addf %26, %35 : vector<10x256xf32>
    %c0_11 = arith.constant 0 : index
    %c512 = arith.constant 512 : index
    %37 = vector.load %arg3[%c0_11, %c512] : memref<10x4096xf32, #tpu.memory_space<vmem>>, vector<10x256xf32>
    %38 = vector.extract_strided_slice %14 {offsets = [2, 0], sizes = [1, 512], strides = [1, 1]} : vector<16x512xf32> to vector<1x512xf32>
    %39 = vector.extract_strided_slice %38 {offsets = [0, 0], sizes = [1, 256], strides = [1, 1]} : vector<1x512xf32> to vector<1x256xf32>
    %40 = vector.broadcast %39 : vector<1x256xf32> to vector<10x256xf32>
    %41 = arith.mulf %37, %40 : vector<10x256xf32>
    %42 = arith.addf %32, %41 : vector<10x256xf32>
    %43 = vector.extract_strided_slice %38 {offsets = [0, 256], sizes = [1, 256], strides = [1, 1]} : vector<1x512xf32> to vector<1x256xf32>
    %44 = vector.broadcast %43 : vector<1x256xf32> to vector<10x256xf32>
    %45 = arith.mulf %37, %44 : vector<10x256xf32>
    %46 = arith.addf %36, %45 : vector<10x256xf32>
    %c0_12 = arith.constant 0 : index
    %c768 = arith.constant 768 : index
    %47 = vector.load %arg3[%c0_12, %c768] : memref<10x4096xf32, #tpu.memory_space<vmem>>, vector<10x256xf32>
    %48 = vector.extract_strided_slice %14 {offsets = [3, 0], sizes = [1, 512], strides = [1, 1]} : vector<16x512xf32> to vector<1x512xf32>
    %49 = vector.extract_strided_slice %48 {offsets = [0, 0], sizes = [1, 256], strides = [1, 1]} : vector<1x512xf32> to vector<1x256xf32>
    %50 = vector.broadcast %49 : vector<1x256xf32> to vector<10x256xf32>
    %51 = arith.mulf %47, %50 : vector<10x256xf32>
    %52 = arith.addf %42, %51 : vector<10x256xf32>
    %53 = vector.extract_strided_slice %48 {offsets = [0, 256], sizes = [1, 256], strides = [1, 1]} : vector<1x512xf32> to vector<1x256xf32>
    %54 = vector.broadcast %53 : vector<1x256xf32> to vector<10x256xf32>
    %55 = arith.mulf %47, %54 : vector<10x256xf32>
    %56 = arith.addf %46, %55 : vector<10x256xf32>
    %c0_13 = arith.constant 0 : index
    %c1024 = arith.constant 1024 : index
    %57 = vector.load %arg3[%c0_13, %c1024] : memref<10x4096xf32, #tpu.memory_space<vmem>>, vector<10x256xf32>
    %58 = vector.extract_strided_slice %14 {offsets = [4, 0], sizes = [1, 512], strides = [1, 1]} : vector<16x512xf32> to vector<1x512xf32>
    %59 = vector.extract_strided_slice %58 {offsets = [0, 0], sizes = [1, 256], strides = [1, 1]} : vector<1x512xf32> to vector<1x256xf32>
    %60 = vector.broadcast %59 : vector<1x256xf32> to vector<10x256xf32>
    %61 = arith.mulf %57, %60 : vector<10x256xf32>
    %62 = arith.addf %52, %61 : vector<10x256xf32>
    %63 = vector.extract_strided_slice %58 {offsets = [0, 256], sizes = [1, 256], strides = [1, 1]} : vector<1x512xf32> to vector<1x256xf32>
    %64 = vector.broadcast %63 : vector<1x256xf32> to vector<10x256xf32>
    %65 = arith.mulf %57, %64 : vector<10x256xf32>
    %66 = arith.addf %56, %65 : vector<10x256xf32>
    %c0_14 = arith.constant 0 : index
    %c1280 = arith.constant 1280 : index
    %67 = vector.load %arg3[%c0_14, %c1280] : memref<10x4096xf32, #tpu.memory_space<vmem>>, vector<10x256xf32>
    %68 = vector.extract_strided_slice %14 {offsets = [5, 0], sizes = [1, 512], strides = [1, 1]} : vector<16x512xf32> to vector<1x512xf32>
    %69 = vector.extract_strided_slice %68 {offsets = [0, 0], sizes = [1, 256], strides = [1, 1]} : vector<1x512xf32> to vector<1x256xf32>
    %70 = vector.broadcast %69 : vector<1x256xf32> to vector<10x256xf32>
    %71 = arith.mulf %67, %70 : vector<10x256xf32>
    %72 = arith.addf %62, %71 : vector<10x256xf32>
    %73 = vector.extract_strided_slice %68 {offsets = [0, 256], sizes = [1, 256], strides = [1, 1]} : vector<1x512xf32> to vector<1x256xf32>
    %74 = vector.broadcast %73 : vector<1x256xf32> to vector<10x256xf32>
    %75 = arith.mulf %67, %74 : vector<10x256xf32>
    %76 = arith.addf %66, %75 : vector<10x256xf32>
    %c0_15 = arith.constant 0 : index
    %c1536 = arith.constant 1536 : index
    %77 = vector.load %arg3[%c0_15, %c1536] : memref<10x4096xf32, #tpu.memory_space<vmem>>, vector<10x256xf32>
    %78 = vector.extract_strided_slice %14 {offsets = [6, 0], sizes = [1, 512], strides = [1, 1]} : vector<16x512xf32> to vector<1x512xf32>
    %79 = vector.extract_strided_slice %78 {offsets = [0, 0], sizes = [1, 256], strides = [1, 1]} : vector<1x512xf32> to vector<1x256xf32>
    %80 = vector.broadcast %79 : vector<1x256xf32> to vector<10x256xf32>
    %81 = arith.mulf %77, %80 : vector<10x256xf32>
    %82 = arith.addf %72, %81 : vector<10x256xf32>
    %83 = vector.extract_strided_slice %78 {offsets = [0, 256], sizes = [1, 256], strides = [1, 1]} : vector<1x512xf32> to vector<1x256xf32>
    %84 = vector.broadcast %83 : vector<1x256xf32> to vector<10x256xf32>
    %85 = arith.mulf %77, %84 : vector<10x256xf32>
    %86 = arith.addf %76, %85 : vector<10x256xf32>
    %c0_16 = arith.constant 0 : index
    %c1792 = arith.constant 1792 : index
    %87 = vector.load %arg3[%c0_16, %c1792] : memref<10x4096xf32, #tpu.memory_space<vmem>>, vector<10x256xf32>
    %88 = vector.extract_strided_slice %14 {offsets = [7, 0], sizes = [1, 512], strides = [1, 1]} : vector<16x512xf32> to vector<1x512xf32>
    %89 = vector.extract_strided_slice %88 {offsets = [0, 0], sizes = [1, 256], strides = [1, 1]} : vector<1x512xf32> to vector<1x256xf32>
    %90 = vector.broadcast %89 : vector<1x256xf32> to vector<10x256xf32>
    %91 = arith.mulf %87, %90 : vector<10x256xf32>
    %92 = arith.addf %82, %91 : vector<10x256xf32>
    %93 = vector.extract_strided_slice %88 {offsets = [0, 256], sizes = [1, 256], strides = [1, 1]} : vector<1x512xf32> to vector<1x256xf32>
    %94 = vector.broadcast %93 : vector<1x256xf32> to vector<10x256xf32>
    %95 = arith.mulf %87, %94 : vector<10x256xf32>
    %96 = arith.addf %86, %95 : vector<10x256xf32>
    %c0_17 = arith.constant 0 : index
    %c2048 = arith.constant 2048 : index
    %97 = vector.load %arg3[%c0_17, %c2048] : memref<10x4096xf32, #tpu.memory_space<vmem>>, vector<10x256xf32>
    %98 = vector.extract_strided_slice %14 {offsets = [8, 0], sizes = [1, 512], strides = [1, 1]} : vector<16x512xf32> to vector<1x512xf32>
    %99 = vector.extract_strided_slice %98 {offsets = [0, 0], sizes = [1, 256], strides = [1, 1]} : vector<1x512xf32> to vector<1x256xf32>
    %100 = vector.broadcast %99 : vector<1x256xf32> to vector<10x256xf32>
    %101 = arith.mulf %97, %100 : vector<10x256xf32>
    %102 = arith.addf %92, %101 : vector<10x256xf32>
    %103 = vector.extract_strided_slice %98 {offsets = [0, 256], sizes = [1, 256], strides = [1, 1]} : vector<1x512xf32> to vector<1x256xf32>
    %104 = vector.broadcast %103 : vector<1x256xf32> to vector<10x256xf32>
    %105 = arith.mulf %97, %104 : vector<10x256xf32>
    %106 = arith.addf %96, %105 : vector<10x256xf32>
    %c0_18 = arith.constant 0 : index
    %c2304 = arith.constant 2304 : index
    %107 = vector.load %arg3[%c0_18, %c2304] : memref<10x4096xf32, #tpu.memory_space<vmem>>, vector<10x256xf32>
    %108 = vector.extract_strided_slice %14 {offsets = [9, 0], sizes = [1, 512], strides = [1, 1]} : vector<16x512xf32> to vector<1x512xf32>
    %109 = vector.extract_strided_slice %108 {offsets = [0, 0], sizes = [1, 256], strides = [1, 1]} : vector<1x512xf32> to vector<1x256xf32>
    %110 = vector.broadcast %109 : vector<1x256xf32> to vector<10x256xf32>
    %111 = arith.mulf %107, %110 : vector<10x256xf32>
    %112 = arith.addf %102, %111 : vector<10x256xf32>
    %113 = vector.extract_strided_slice %108 {offsets = [0, 256], sizes = [1, 256], strides = [1, 1]} : vector<1x512xf32> to vector<1x256xf32>
    %114 = vector.broadcast %113 : vector<1x256xf32> to vector<10x256xf32>
    %115 = arith.mulf %107, %114 : vector<10x256xf32>
    %116 = arith.addf %106, %115 : vector<10x256xf32>
    %c0_19 = arith.constant 0 : index
    %c2560 = arith.constant 2560 : index
    %117 = vector.load %arg3[%c0_19, %c2560] : memref<10x4096xf32, #tpu.memory_space<vmem>>, vector<10x256xf32>
    %118 = vector.extract_strided_slice %14 {offsets = [10, 0], sizes = [1, 512], strides = [1, 1]} : vector<16x512xf32> to vector<1x512xf32>
    %119 = vector.extract_strided_slice %118 {offsets = [0, 0], sizes = [1, 256], strides = [1, 1]} : vector<1x512xf32> to vector<1x256xf32>
    %120 = vector.broadcast %119 : vector<1x256xf32> to vector<10x256xf32>
    %121 = arith.mulf %117, %120 : vector<10x256xf32>
    %122 = arith.addf %112, %121 : vector<10x256xf32>
    %123 = vector.extract_strided_slice %118 {offsets = [0, 256], sizes = [1, 256], strides = [1, 1]} : vector<1x512xf32> to vector<1x256xf32>
    %124 = vector.broadcast %123 : vector<1x256xf32> to vector<10x256xf32>
    %125 = arith.mulf %117, %124 : vector<10x256xf32>
    %126 = arith.addf %116, %125 : vector<10x256xf32>
    %c0_20 = arith.constant 0 : index
    %c2816 = arith.constant 2816 : index
    %127 = vector.load %arg3[%c0_20, %c2816] : memref<10x4096xf32, #tpu.memory_space<vmem>>, vector<10x256xf32>
    %128 = vector.extract_strided_slice %14 {offsets = [11, 0], sizes = [1, 512], strides = [1, 1]} : vector<16x512xf32> to vector<1x512xf32>
    %129 = vector.extract_strided_slice %128 {offsets = [0, 0], sizes = [1, 256], strides = [1, 1]} : vector<1x512xf32> to vector<1x256xf32>
    %130 = vector.broadcast %129 : vector<1x256xf32> to vector<10x256xf32>
    %131 = arith.mulf %127, %130 : vector<10x256xf32>
    %132 = arith.addf %122, %131 : vector<10x256xf32>
    %133 = vector.extract_strided_slice %128 {offsets = [0, 256], sizes = [1, 256], strides = [1, 1]} : vector<1x512xf32> to vector<1x256xf32>
    %134 = vector.broadcast %133 : vector<1x256xf32> to vector<10x256xf32>
    %135 = arith.mulf %127, %134 : vector<10x256xf32>
    %136 = arith.addf %126, %135 : vector<10x256xf32>
    %c0_21 = arith.constant 0 : index
    %c3072 = arith.constant 3072 : index
    %137 = vector.load %arg3[%c0_21, %c3072] : memref<10x4096xf32, #tpu.memory_space<vmem>>, vector<10x256xf32>
    %138 = vector.extract_strided_slice %14 {offsets = [12, 0], sizes = [1, 512], strides = [1, 1]} : vector<16x512xf32> to vector<1x512xf32>
    %139 = vector.extract_strided_slice %138 {offsets = [0, 0], sizes = [1, 256], strides = [1, 1]} : vector<1x512xf32> to vector<1x256xf32>
    %140 = vector.broadcast %139 : vector<1x256xf32> to vector<10x256xf32>
    %141 = arith.mulf %137, %140 : vector<10x256xf32>
    %142 = arith.addf %132, %141 : vector<10x256xf32>
    %143 = vector.extract_strided_slice %138 {offsets = [0, 256], sizes = [1, 256], strides = [1, 1]} : vector<1x512xf32> to vector<1x256xf32>
    %144 = vector.broadcast %143 : vector<1x256xf32> to vector<10x256xf32>
    %145 = arith.mulf %137, %144 : vector<10x256xf32>
    %146 = arith.addf %136, %145 : vector<10x256xf32>
    %c0_22 = arith.constant 0 : index
    %c3328 = arith.constant 3328 : index
    %147 = vector.load %arg3[%c0_22, %c3328] : memref<10x4096xf32, #tpu.memory_space<vmem>>, vector<10x256xf32>
    %148 = vector.extract_strided_slice %14 {offsets = [13, 0], sizes = [1, 512], strides = [1, 1]} : vector<16x512xf32> to vector<1x512xf32>
    %149 = vector.extract_strided_slice %148 {offsets = [0, 0], sizes = [1, 256], strides = [1, 1]} : vector<1x512xf32> to vector<1x256xf32>
    %150 = vector.broadcast %149 : vector<1x256xf32> to vector<10x256xf32>
    %151 = arith.mulf %147, %150 : vector<10x256xf32>
    %152 = arith.addf %142, %151 : vector<10x256xf32>
    %153 = vector.extract_strided_slice %148 {offsets = [0, 256], sizes = [1, 256], strides = [1, 1]} : vector<1x512xf32> to vector<1x256xf32>
    %154 = vector.broadcast %153 : vector<1x256xf32> to vector<10x256xf32>
    %155 = arith.mulf %147, %154 : vector<10x256xf32>
    %156 = arith.addf %146, %155 : vector<10x256xf32>
    %c0_23 = arith.constant 0 : index
    %c3584 = arith.constant 3584 : index
    %157 = vector.load %arg3[%c0_23, %c3584] : memref<10x4096xf32, #tpu.memory_space<vmem>>, vector<10x256xf32>
    %158 = vector.extract_strided_slice %14 {offsets = [14, 0], sizes = [1, 512], strides = [1, 1]} : vector<16x512xf32> to vector<1x512xf32>
    %159 = vector.extract_strided_slice %158 {offsets = [0, 0], sizes = [1, 256], strides = [1, 1]} : vector<1x512xf32> to vector<1x256xf32>
    %160 = vector.broadcast %159 : vector<1x256xf32> to vector<10x256xf32>
    %161 = arith.mulf %157, %160 : vector<10x256xf32>
    %162 = arith.addf %152, %161 : vector<10x256xf32>
    %163 = vector.extract_strided_slice %158 {offsets = [0, 256], sizes = [1, 256], strides = [1, 1]} : vector<1x512xf32> to vector<1x256xf32>
    %164 = vector.broadcast %163 : vector<1x256xf32> to vector<10x256xf32>
    %165 = arith.mulf %157, %164 : vector<10x256xf32>
    %166 = arith.addf %156, %165 : vector<10x256xf32>
    %c0_24 = arith.constant 0 : index
    %c3840 = arith.constant 3840 : index
    %167 = vector.load %arg3[%c0_24, %c3840] : memref<10x4096xf32, #tpu.memory_space<vmem>>, vector<10x256xf32>
    %168 = vector.extract_strided_slice %14 {offsets = [15, 0], sizes = [1, 512], strides = [1, 1]} : vector<16x512xf32> to vector<1x512xf32>
    %169 = vector.extract_strided_slice %168 {offsets = [0, 0], sizes = [1, 256], strides = [1, 1]} : vector<1x512xf32> to vector<1x256xf32>
    %170 = vector.broadcast %169 : vector<1x256xf32> to vector<10x256xf32>
    %171 = arith.mulf %167, %170 : vector<10x256xf32>
    %172 = arith.addf %162, %171 : vector<10x256xf32>
    %173 = vector.extract_strided_slice %168 {offsets = [0, 256], sizes = [1, 256], strides = [1, 1]} : vector<1x512xf32> to vector<1x256xf32>
    %174 = vector.broadcast %173 : vector<1x256xf32> to vector<10x256xf32>
    %175 = arith.mulf %167, %174 : vector<10x256xf32>
    %176 = arith.addf %166, %175 : vector<10x256xf32>
    %177 = tpu.iota {dimensions = array<i32: 1>} : vector<10x2xi32>
    %c0_i32 = arith.constant 0 : i32
    %178 = vector.broadcast %c0_i32 : i32 to vector<10x2xi32>
    %179 = arith.cmpi eq, %177, %178 : vector<10x2xi32>
    %cst_25 = arith.constant dense<0.000000e+00> : vector<10xf32>
    %180 = vector.multi_reduction <add>, %172, %cst_25 [1] : vector<10x256xf32> to vector<10xf32>
    %181 = vector.shape_cast %180 : vector<10xf32> to vector<10x1xf32>
    %cst_26 = arith.constant 0.000000e+00 : f32
    %182 = vector.shape_cast %181 : vector<10x1xf32> to vector<10x1xf32>
    %183 = vector.broadcast %182 : vector<10x1xf32> to vector<10x2xf32>
    %184 = vector.broadcast %cst_26 : f32 to vector<10x2xf32>
    %185 = arith.select %179, %183, %184 : vector<10x2xi1>, vector<10x2xf32>
    %cst_27 = arith.constant 0.000000e+00 : f32
    %186 = vector.broadcast %cst_27 : f32 to vector<10x2xf32>
    %187 = arith.addf %186, %185 : vector<10x2xf32>
    %c1_i32 = arith.constant 1 : i32
    %188 = vector.broadcast %c1_i32 : i32 to vector<10x2xi32>
    %189 = arith.cmpi eq, %177, %188 : vector<10x2xi32>
    %cst_28 = arith.constant dense<0.000000e+00> : vector<10xf32>
    %190 = vector.multi_reduction <add>, %176, %cst_28 [1] : vector<10x256xf32> to vector<10xf32>
    %191 = vector.shape_cast %190 : vector<10xf32> to vector<10x1xf32>
    %cst_29 = arith.constant 0.000000e+00 : f32
    %192 = vector.shape_cast %191 : vector<10x1xf32> to vector<10x1xf32>
    %193 = vector.broadcast %192 : vector<10x1xf32> to vector<10x2xf32>
    %194 = vector.broadcast %cst_29 : f32 to vector<10x2xf32>
    %195 = arith.select %189, %193, %194 : vector<10x2xi1>, vector<10x2xf32>
    %196 = arith.addf %187, %195 : vector<10x2xf32>
    %c0_30 = arith.constant 0 : index
    %c0_31 = arith.constant 0 : index
    %197 = vector.load %arg4[%c0_30, %c0_31] : memref<10x1xf32, #tpu.memory_space<vmem>>, vector<10x1xf32>
    %198 = vector.broadcast %197 : vector<10x1xf32> to vector<10x2xf32>
    %199 = arith.addf %196, %198 : vector<10x2xf32>
    %c0_32 = arith.constant 0 : index
    %c0_33 = arith.constant 0 : index
    %200 = vector.load %arg5[%c0_32, %c0_33] : memref<10x2xf32, #tpu.memory_space<vmem>>, vector<10x2xf32>
    tpu.vector_store %arg5[%c0_32, %c0_33], %199 {strides = array<i32>} : memref<10x2xf32, #tpu.memory_space<vmem>>, vector<10x2xf32>,
    return
  }
}

</mosaic_0001>

<llo_original>
// kernel: mnist_cnn_forward.1
$region0: #{mnist_cnn_forward.1}
  #allocation0 [shape = 'u32[]', space=smem, size = 0x4, offset = 0x4, fixed_abs, tag = 'smem constant byte address 0x4 - core index']
  #allocation1 [shape = 'u32[72,128]{1,0:T(1,128)}', space=vmem, size = 0x9000, scoped, tag = 'internal scratch']
  %s0 = inlined_call_operand.vmem [shape: f32[512,36], index: 0, kind: input, shape index: {}]
  %s1 = inlined_call_operand.vmem [shape: f32[64,36], index: 1, kind: input, shape index: {}]
  %s2 = inlined_call_operand.vmem [shape: f32[16,1], index: 2, kind: input, shape index: {}]
  %s3 = inlined_call_operand.vmem [shape: f32[10,4096], index: 3, kind: input, shape index: {}]
  %s4 = inlined_call_operand.vmem [shape: f32[10,1], index: 4, kind: input, shape index: {}]
  %s5 = inlined_call_operand.vmem [shape: f32[10,2], index: 5, kind: output, shape index: {}]
  %s6 = sld [smem:[#allocation0]]
  $region30: #{mnist_cnn_forward.1} parent=0
    _
  %s8 = ssub.s32 1, %s6
  %s9 = scalar_select 0, %s8, %s6
  // Predicated region
  $region2: #{mnist_cnn_forward.1} parent=0 // pred_check
    _
  $region3: #{mnist_cnn_forward.1} parent=0 // pred_check_branch
    %11 = sbr.rel (0) target = $region5
  $region4: #{mnist_cnn_forward.1} parent=0 // pred_region
    _
  $region5: #{mnist_cnn_forward.1} parent=0 // pred_fallthru
    _
  // Predicated region
  $region6: #{mnist_cnn_forward.1} parent=0 // pred_check
    _
  $region7: #{mnist_cnn_forward.1} parent=0 // pred_check_branch
    %13 = sbr.rel (0) target = $region9
  $region8: #{mnist_cnn_forward.1} parent=0 // pred_region
    _
  $region9: #{mnist_cnn_forward.1} parent=0 // pred_fallthru
    _
  // Predicated region
  $region10: #{mnist_cnn_forward.1} parent=0 // pred_check
    _
  $region11: #{mnist_cnn_forward.1} parent=0 // pred_check_branch
    %15 = sbr.rel (0) target = $region13
  $region12: #{mnist_cnn_forward.1} parent=0 // pred_region
    _
  $region13: #{mnist_cnn_forward.1} parent=0 // pred_fallthru
    _
  // Predicated region
  $region14: #{mnist_cnn_forward.1} parent=0 // pred_check
    _
  $region15: #{mnist_cnn_forward.1} parent=0 // pred_check_branch
    %17 = sbr.rel (0) target = $region17
  $region16: #{mnist_cnn_forward.1} parent=0 // pred_region
    _
  $region17: #{mnist_cnn_forward.1} parent=0 // pred_fallthru
    _
  // Predicated region
  $region18: #{mnist_cnn_forward.1} parent=0 // pred_check
    _
  $region19: #{mnist_cnn_forward.1} parent=0 // pred_check_branch
    %19 = sbr.rel (0) target = $region21
  $region20: #{mnist_cnn_forward.1} parent=0 // pred_region
    _
  $region21: #{mnist_cnn_forward.1} parent=0 // pred_fallthru
    _
  %v20 = vld [vmem:[%s1] sm:$0xff]
  %v21 = vld [vmem:[%s1 + $0x8] sm:$0xff]
  %v22 = vld [vmem:[%s1 + $0x10] sm:$0xff]
  %v23 = vld [vmem:[%s1 + $0x18] sm:$0xff]
  %v24 = vld [vmem:[%s1 + $0x20] sm:$0xff]
  %v25 = vld [vmem:[%s1 + $0x28] sm:$0xff]
  %v26 = vld [vmem:[%s1 + $0x30] sm:$0xff]
  %v27 = vld [vmem:[%s1 + $0x38] sm:$0xff]
  %v28 = vld [vmem:[%s0] sm:$0xff]
  %v29 = vld [vmem:[%s0 + $0x8] sm:$0xff]
  %v30 = vld [vmem:[%s0 + $0x10] sm:$0xff]
  %v31 = vld [vmem:[%s0 + $0x18] sm:$0xff]
  %v32 = vld [vmem:[%s0 + $0x20] sm:$0xff]
  %v33 = vld [vmem:[%s0 + $0x28] sm:$0xff]
  %v34 = vld [vmem:[%s0 + $0x30] sm:$0xff]
  %v35 = vld [vmem:[%s0 + $0x38] sm:$0xff]
  %v36 = vld [vmem:[%s0 + $0x40] sm:$0xff]
  %v37 = vld [vmem:[%s0 + $0x48] sm:$0xff]
  %v38 = vld [vmem:[%s0 + $0x50] sm:$0xff]
  %v39 = vld [vmem:[%s0 + $0x58] sm:$0xff]
  %v40 = vld [vmem:[%s0 + $0x60] sm:$0xff]
  %v41 = vld [vmem:[%s0 + $0x68] sm:$0xff]
  %v42 = vld [vmem:[%s0 + $0x70] sm:$0xff]
  %v43 = vld [vmem:[%s0 + $0x78] sm:$0xff]
  %v44 = vld [vmem:[%s0 + $0x80] sm:$0xff]
  %v45 = vld [vmem:[%s0 + $0x88] sm:$0xff]
  %v46 = vld [vmem:[%s0 + $0x90] sm:$0xff]
  %v47 = vld [vmem:[%s0 + $0x98] sm:$0xff]
  %v48 = vld [vmem:[%s0 + $0xa0] sm:$0xff]
  %v49 = vld [vmem:[%s0 + $0xa8] sm:$0xff]
  %v50 = vld [vmem:[%s0 + $0xb0] sm:$0xff]
  %v51 = vld [vmem:[%s0 + $0xb8] sm:$0xff]
  %v52 = vld [vmem:[%s0 + $0xc0] sm:$0xff]
  %v53 = vld [vmem:[%s0 + $0xc8] sm:$0xff]
  %v54 = vld [vmem:[%s0 + $0xd0] sm:$0xff]
  %v55 = vld [vmem:[%s0 + $0xd8] sm:$0xff]
  %v56 = vld [vmem:[%s0 + $0xe0] sm:$0xff]
  %v57 = vld [vmem:[%s0 + $0xe8] sm:$0xff]
  %v58 = vld [vmem:[%s0 + $0xf0] sm:$0xff]
  %v59 = vld [vmem:[%s0 + $0xf8] sm:$0xff]
  %v60 = vld [vmem:[%s0 + $0x100] sm:$0xff]
  %v61 = vld [vmem:[%s0 + $0x108] sm:$0xff]
  %v62 = vld [vmem:[%s0 + $0x110] sm:$0xff]
  %v63 = vld [vmem:[%s0 + $0x118] sm:$0xff]
  %v64 = vld [vmem:[%s0 + $0x120] sm:$0xff]
  %v65 = vld [vmem:[%s0 + $0x128] sm:$0xff]
  %v66 = vld [vmem:[%s0 + $0x130] sm:$0xff]
  %v67 = vld [vmem:[%s0 + $0x138] sm:$0xff]
  %v68 = vld [vmem:[%s0 + $0x140] sm:$0xff]
  %v69 = vld [vmem:[%s0 + $0x148] sm:$0xff]
  %v70 = vld [vmem:[%s0 + $0x150] sm:$0xff]
  %v71 = vld [vmem:[%s0 + $0x158] sm:$0xff]
  %v72 = vld [vmem:[%s0 + $0x160] sm:$0xff]
  %v73 = vld [vmem:[%s0 + $0x168] sm:$0xff]
  %v74 = vld [vmem:[%s0 + $0x170] sm:$0xff]
  %v75 = vld [vmem:[%s0 + $0x178] sm:$0xff]
  %v76 = vld [vmem:[%s0 + $0x180] sm:$0xff]
  %v77 = vld [vmem:[%s0 + $0x188] sm:$0xff]
  %v78 = vld [vmem:[%s0 + $0x190] sm:$0xff]
  %v79 = vld [vmem:[%s0 + $0x198] sm:$0xff]
  %v80 = vld [vmem:[%s0 + $0x1a0] sm:$0xff]
  %v81 = vld [vmem:[%s0 + $0x1a8] sm:$0xff]
  %v82 = vld [vmem:[%s0 + $0x1b0] sm:$0xff]
  %v83 = vld [vmem:[%s0 + $0x1b8] sm:$0xff]
  %v84 = vld [vmem:[%s0 + $0x1c0] sm:$0xff]
  %v85 = vld [vmem:[%s0 + $0x1c8] sm:$0xff]
  %v86 = vld [vmem:[%s0 + $0x1d0] sm:$0xff]
  %v87 = vld [vmem:[%s0 + $0x1d8] sm:$0xff]
  %v88 = vld [vmem:[%s0 + $0x1e0] sm:$0xff]
  %v89 = vld [vmem:[%s0 + $0x1e8] sm:$0xff]
  %v90 = vld [vmem:[%s0 + $0x1f0] sm:$0xff]
  %v91 = vld [vmem:[%s0 + $0x1f8] sm:$0xff]
  %vm92 = vcmask 293888
  %v94 = vsel %vm92, %v20, 0
  %v97 = vsel %vm92, %v21, 0
  %v100 = vsel %vm92, %v22, 0
  %v103 = vsel %vm92, %v23, 0
  %v106 = vsel %vm92, %v24, 0
  %v109 = vsel %vm92, %v25, 0
  %v112 = vsel %vm92, %v26, 0
  %v115 = vsel %vm92, %v27, 0
  %v118 = vsel %vm92, %v28, 0
  %v121 = vsel %vm92, %v29, 0
  %v124 = vsel %vm92, %v30, 0
  %v127 = vsel %vm92, %v31, 0
  %v130 = vsel %vm92, %v32, 0
  %v133 = vsel %vm92, %v33, 0
  %v136 = vsel %vm92, %v34, 0
  %v139 = vsel %vm92, %v35, 0
  %v142 = vsel %vm92, %v36, 0
  %v145 = vsel %vm92, %v37, 0
  %v148 = vsel %vm92, %v38, 0
  %v151 = vsel %vm92, %v39, 0
  %v154 = vsel %vm92, %v40, 0
  %v157 = vsel %vm92, %v41, 0
  %v160 = vsel %vm92, %v42, 0
  %v163 = vsel %vm92, %v43, 0
  %v166 = vsel %vm92, %v44, 0
  %v169 = vsel %vm92, %v45, 0
  %v172 = vsel %vm92, %v46, 0
  %v175 = vsel %vm92, %v47, 0
  %v178 = vsel %vm92, %v48, 0
  %v181 = vsel %vm92, %v49, 0
  %v184 = vsel %vm92, %v50, 0
  %v187 = vsel %vm92, %v51, 0
  %v190 = vsel %vm92, %v52, 0
  %v193 = vsel %vm92, %v53, 0
  %v196 = vsel %vm92, %v54, 0
  %v199 = vsel %vm92, %v55, 0
  %v202 = vsel %vm92, %v56, 0
  %v205 = vsel %vm92, %v57, 0
  %v208 = vsel %vm92, %v58, 0
  %v211 = vsel %vm92, %v59, 0
  %v214 = vsel %vm92, %v60, 0
  %v217 = vsel %vm92, %v61, 0
  %v220 = vsel %vm92, %v62, 0
  %v223 = vsel %vm92, %v63, 0
  %v226 = vsel %vm92, %v64, 0
  %v229 = vsel %vm92, %v65, 0
  %v232 = vsel %vm92, %v66, 0
  %v235 = vsel %vm92, %v67, 0
  %v238 = vsel %vm92, %v68, 0
  %v241 = vsel %vm92, %v69, 0
  %v244 = vsel %vm92, %v70, 0
  %v247 = vsel %vm92, %v71, 0
  %v250 = vsel %vm92, %v72, 0
  %v253 = vsel %vm92, %v73, 0
  %v256 = vsel %vm92, %v74, 0
  %v259 = vsel %vm92, %v75, 0
  %v262 = vsel %vm92, %v76, 0
  %v265 = vsel %vm92, %v77, 0
  %v268 = vsel %vm92, %v78, 0
  %v271 = vsel %vm92, %v79, 0
  %v274 = vsel %vm92, %v80, 0
  %v277 = vsel %vm92, %v81, 0
  %v280 = vsel %vm92, %v82, 0
  %v283 = vsel %vm92, %v83, 0
  %v286 = vsel %vm92, %v84, 0
  %v289 = vsel %vm92, %v85, 0
  %v292 = vsel %vm92, %v86, 0
  %v295 = vsel %vm92, %v87, 0
  %v298 = vsel %vm92, %v88, 0
  %v301 = vsel %vm92, %v89, 0
  %v304 = vsel %vm92, %v90, 0
  %v307 = vsel %vm92, %v91, 0
  %309 = vmatpush.xpose.msra.mxu0 %v163
  %310 = vmatpush.xpose.msra.mxu0 %v160
  %311 = vmatpush.xpose.msra.mxu0 %v157
  %312 = vmatpush.xpose.msra.mxu0 %v154
  %313 = vmatpush.xpose.msra.mxu0 %v151
  %314 = vmatpush.xpose.msra.mxu0 %v148
  %315 = vmatpush.xpose.msra.mxu0 %v145
  %316 = vmatpush.xpose.msra.mxu0 %v142
  %317 = vmatpush.xpose.msra.mxu0 %v139
  %318 = vmatpush.xpose.msra.mxu0 %v136
  %319 = vmatpush.xpose.msra.mxu0 %v133
  %320 = vmatpush.xpose.msra.mxu0 %v130
  %321 = vmatpush.xpose.msra.mxu0 %v127
  %322 = vmatpush.xpose.msra.mxu0 %v124
  %323 = vmatpush.xpose.msra.mxu0 %v121
  %324 = vmatpush.xpose.msra.mxu0 %v118
  %325 = vmatmul.f32.gmra.mxu0 %v94
  %v326 = vpop.f32.mrf.mxu0
  %v327 = vadd.f32 0.0, %v326
  %328 = vmatmul.f32.gmra.mxu0 %v97
  %v329 = vpop.f32.mrf.mxu0
  %v330 = vadd.f32 0.0, %v329
  %331 = vmatmul.f32.gmra.mxu0 %v100
  %v332 = vpop.f32.mrf.mxu0
  %v333 = vadd.f32 0.0, %v332
  %334 = vmatmul.f32.gmra.mxu0 %v103
  %v335 = vpop.f32.mrf.mxu0
  %v336 = vadd.f32 0.0, %v335
  %337 = vmatmul.f32.gmra.mxu0 %v106
  %v338 = vpop.f32.mrf.mxu0
  %v339 = vadd.f32 0.0, %v338
  %340 = vmatmul.f32.gmra.mxu0 %v109
  %v341 = vpop.f32.mrf.mxu0
  %v342 = vadd.f32 0.0, %v341
  %343 = vmatmul.f32.gmra.mxu0 %v112
  %v344 = vpop.f32.mrf.mxu0
  %v345 = vadd.f32 0.0, %v344
  %346 = vmatmul.f32.gmra.mxu0 %v115
  %v347 = vpop.f32.mrf.mxu0
  %v348 = vadd.f32 0.0, %v347
  %349 = vdwg.mxu0
  %350 = vmatpush.xpose.msra.mxu0 %v211
  %351 = vmatpush.xpose.msra.mxu0 %v208
  %352 = vmatpush.xpose.msra.mxu0 %v205
  %353 = vmatpush.xpose.msra.mxu0 %v202
  %354 = vmatpush.xpose.msra.mxu0 %v199
  %355 = vmatpush.xpose.msra.mxu0 %v196
  %356 = vmatpush.xpose.msra.mxu0 %v193
  %357 = vmatpush.xpose.msra.mxu0 %v190
  %358 = vmatpush.xpose.msra.mxu0 %v187
  %359 = vmatpush.xpose.msra.mxu0 %v184
  %360 = vmatpush.xpose.msra.mxu0 %v181
  %361 = vmatpush.xpose.msra.mxu0 %v178
  %362 = vmatpush.xpose.msra.mxu0 %v175
  %363 = vmatpush.xpose.msra.mxu0 %v172
  %364 = vmatpush.xpose.msra.mxu0 %v169
  %365 = vmatpush.xpose.msra.mxu0 %v166
  %366 = vmatmul.f32.gmra.mxu0 %v94
  %v367 = vpop.f32.mrf.mxu0
  %v368 = vadd.f32 0.0, %v367
  %369 = vmatmul.f32.gmra.mxu0 %v97
  %v370 = vpop.f32.mrf.mxu0
  %v371 = vadd.f32 0.0, %v370
  %372 = vmatmul.f32.gmra.mxu0 %v100
  %v373 = vpop.f32.mrf.mxu0
  %v374 = vadd.f32 0.0, %v373
  %375 = vmatmul.f32.gmra.mxu0 %v103
  %v376 = vpop.f32.mrf.mxu0
  %v377 = vadd.f32 0.0, %v376
  %378 = vmatmul.f32.gmra.mxu0 %v106
  %v379 = vpop.f32.mrf.mxu0
  %v380 = vadd.f32 0.0, %v379
  %381 = vmatmul.f32.gmra.mxu0 %v109
  %v382 = vpop.f32.mrf.mxu0
  %v383 = vadd.f32 0.0, %v382
  %384 = vmatmul.f32.gmra.mxu0 %v112
  %v385 = vpop.f32.mrf.mxu0
  %v386 = vadd.f32 0.0, %v385
  %387 = vmatmul.f32.gmra.mxu0 %v115
  %v388 = vpop.f32.mrf.mxu0
  %v389 = vadd.f32 0.0, %v388
  %390 = vdwg.mxu0
  %391 = vmatpush.xpose.msra.mxu0 %v259
  %392 = vmatpush.xpose.msra.mxu0 %v256
  %393 = vmatpush.xpose.msra.mxu0 %v253
  %394 = vmatpush.xpose.msra.mxu0 %v250
  %395 = vmatpush.xpose.msra.mxu0 %v247
  %396 = vmatpush.xpose.msra.mxu0 %v244
  %397 = vmatpush.xpose.msra.mxu0 %v241
  %398 = vmatpush.xpose.msra.mxu0 %v238
  %399 = vmatpush.xpose.msra.mxu0 %v235
  %400 = vmatpush.xpose.msra.mxu0 %v232
  %401 = vmatpush.xpose.msra.mxu0 %v229
  %402 = vmatpush.xpose.msra.mxu0 %v226
  %403 = vmatpush.xpose.msra.mxu0 %v223
  %404 = vmatpush.xpose.msra.mxu0 %v220
  %405 = vmatpush.xpose.msra.mxu0 %v217
  %406 = vmatpush.xpose.msra.mxu0 %v214
  %407 = vmatmul.f32.gmra.mxu0 %v94
  %v408 = vpop.f32.mrf.mxu0
  %v409 = vadd.f32 0.0, %v408
  %410 = vmatmul.f32.gmra.mxu0 %v97
  %v411 = vpop.f32.mrf.mxu0
  %v412 = vadd.f32 0.0, %v411
  %413 = vmatmul.f32.gmra.mxu0 %v100
  %v414 = vpop.f32.mrf.mxu0
  %v415 = vadd.f32 0.0, %v414
  %416 = vmatmul.f32.gmra.mxu0 %v103
  %v417 = vpop.f32.mrf.mxu0
  %v418 = vadd.f32 0.0, %v417
  %419 = vmatmul.f32.gmra.mxu0 %v106
  %v420 = vpop.f32.mrf.mxu0
  %v421 = vadd.f32 0.0, %v420
  %422 = vmatmul.f32.gmra.mxu0 %v109
  %v423 = vpop.f32.mrf.mxu0
  %v424 = vadd.f32 0.0, %v423
  %425 = vmatmul.f32.gmra.mxu0 %v112
  %v426 = vpop.f32.mrf.mxu0
  %v427 = vadd.f32 0.0, %v426
  %428 = vmatmul.f32.gmra.mxu0 %v115
  %v429 = vpop.f32.mrf.mxu0
  %v430 = vadd.f32 0.0, %v429
  %431 = vdwg.mxu0
  %432 = vmatpush.xpose.msra.mxu0 %v307
  %433 = vmatpush.xpose.msra.mxu0 %v304
  %434 = vmatpush.xpose.msra.mxu0 %v301
  %435 = vmatpush.xpose.msra.mxu0 %v298
  %436 = vmatpush.xpose.msra.mxu0 %v295
  %437 = vmatpush.xpose.msra.mxu0 %v292
  %438 = vmatpush.xpose.msra.mxu0 %v289
  %439 = vmatpush.xpose.msra.mxu0 %v286
  %440 = vmatpush.xpose.msra.mxu0 %v283
  %441 = vmatpush.xpose.msra.mxu0 %v280
  %442 = vmatpush.xpose.msra.mxu0 %v277
  %443 = vmatpush.xpose.msra.mxu0 %v274
  %444 = vmatpush.xpose.msra.mxu0 %v271
  %445 = vmatpush.xpose.msra.mxu0 %v268
  %446 = vmatpush.xpose.msra.mxu0 %v265
  %447 = vmatpush.xpose.msra.mxu0 %v262
  %448 = vmatmul.f32.gmra.mxu0 %v94
  %v449 = vpop.f32.mrf.mxu0
  %v450 = vadd.f32 0.0, %v449
  %451 = vmatmul.f32.gmra.mxu0 %v97
  %v452 = vpop.f32.mrf.mxu0
  %v453 = vadd.f32 0.0, %v452
  %454 = vmatmul.f32.gmra.mxu0 %v100
  %v455 = vpop.f32.mrf.mxu0
  %v456 = vadd.f32 0.0, %v455
  %457 = vmatmul.f32.gmra.mxu0 %v103
  %v458 = vpop.f32.mrf.mxu0
  %v459 = vadd.f32 0.0, %v458
  %460 = vmatmul.f32.gmra.mxu0 %v106
  %v461 = vpop.f32.mrf.mxu0
  %v462 = vadd.f32 0.0, %v461
  %463 = vmatmul.f32.gmra.mxu0 %v109
  %v464 = vpop.f32.mrf.mxu0
  %v465 = vadd.f32 0.0, %v464
  %466 = vmatmul.f32.gmra.mxu0 %v112
  %v467 = vpop.f32.mrf.mxu0
  %v468 = vadd.f32 0.0, %v467
  %469 = vmatmul.f32.gmra.mxu0 %v115
  %v470 = vpop.f32.mrf.mxu0
  %v471 = vadd.f32 0.0, %v470
  %472 = vdwg.mxu0
  %v473 = vmax.f32 %v327, %v333
  %v474 = vmax.f32 %v368, %v374
  %v475 = vmax.f32 %v409, %v415
  %v476 = vmax.f32 %v450, %v456
  %v477 = vmax.f32 %v330, %v336
  %v478 = vmax.f32 %v371, %v377
  %v479 = vmax.f32 %v412, %v418
  %v480 = vmax.f32 %v453, %v459
  %v481 = vmax.f32 %v339, %v345
  %v482 = vmax.f32 %v380, %v386
  %v483 = vmax.f32 %v421, %v427
  %v484 = vmax.f32 %v462, %v468
  %v485 = vmax.f32 %v342, %v348
  %v486 = vmax.f32 %v383, %v389
  %v487 = vmax.f32 %v424, %v430
  %v488 = vmax.f32 %v465, %v471
  %v489 = vmax.f32 %v473, %v481
  %v490 = vmax.f32 %v474, %v482
  %v491 = vmax.f32 %v475, %v483
  %v492 = vmax.f32 %v476, %v484
  %v493 = vmax.f32 %v477, %v485
  %v494 = vmax.f32 %v478, %v486
  %v495 = vmax.f32 %v479, %v487
  %v496 = vmax.f32 %v480, %v488
  %v497 = vld [vmem:[%s2] sm:$0xff]
  %v498 = vld [vmem:[%s2 + $0x8] sm:$0xff]
  %500 = vset.pattern.permute.xlu0 0
  %501 = vperm.xlu0 %500, %v497
  %v502 = vpop.permute.xlu0 %501
  %505 = vset.pattern.permute.xlu0 0
  %506 = vperm.xlu0 %505, %v498
  %v507 = vpop.permute.xlu0 %506
  %v509 = vadd.f32 %v489, %v502
  %v510 = vadd.f32 %v490, %v502
  %v511 = vadd.f32 %v491, %v502
  %v512 = vadd.f32 %v492, %v502
  %v513 = vadd.f32 %v493, %v507
  %v514 = vadd.f32 %v494, %v507
  %v515 = vadd.f32 %v495, %v507
  %v516 = vadd.f32 %v496, %v507
  %v517 = vmax.f32 %v509, 0.0
  %v518 = vmax.f32 %v510, 0.0
  %v519 = vmax.f32 %v511, 0.0
  %v520 = vmax.f32 %v512, 0.0
  %v521 = vmax.f32 %v513, 0.0
  %v522 = vmax.f32 %v514, 0.0
  %v523 = vmax.f32 %v515, 0.0
  %v524 = vmax.f32 %v516, 0.0
  %v525 = vld [vmem:[%s3] sm:$0xff]
  %v526 = vld [vmem:[%s3 + $0x8] sm:$0xff]
  %v527 = vld [vmem:[%s3 + $0x100] sm:$0x3]
  %v528 = vld [vmem:[%s3 + $0x108] sm:$0x3]
  %v529 = vperm.slane %v517, 0
  %v530 = vperm.slane %v518, 0
  %v531 = vmul.f32 %v525, %v529
  %v532 = vmul.f32 %v526, %v530
  %v533 = vmul.f32 %v527, %v529
  %v534 = vmul.f32 %v528, %v530
  %v535 = vadd.f32 %v531, 0.0
  %v536 = vadd.f32 %v532, 0.0
  %v537 = vadd.f32 %v533, 0.0
  %v538 = vadd.f32 %v534, 0.0
  %v539 = vperm.slane %v519, 0
  %v540 = vperm.slane %v520, 0
  %v541 = vmul.f32 %v525, %v539
  %v542 = vmul.f32 %v526, %v540
  %v543 = vmul.f32 %v527, %v539
  %v544 = vmul.f32 %v528, %v540
  %v545 = vadd.f32 %v541, 0.0
  %v546 = vadd.f32 %v542, 0.0
  %v547 = vadd.f32 %v543, 0.0
  %v548 = vadd.f32 %v544, 0.0
  %v549 = vld [vmem:[%s3 + $0x10] sm:$0xff]
  %v550 = vld [vmem:[%s3 + $0x18] sm:$0xff]
  %v551 = vld [vmem:[%s3 + $0x110] sm:$0x3]
  %v552 = vld [vmem:[%s3 + $0x118] sm:$0x3]
  %v553 = vperm.slane %v517, 1
  %v554 = vperm.slane %v518, 1
  %v555 = vmul.f32 %v549, %v553
  %v556 = vmul.f32 %v550, %v554
  %v557 = vmul.f32 %v551, %v553
  %v558 = vmul.f32 %v552, %v554
  %v559 = vadd.f32 %v535, %v555
  %v560 = vadd.f32 %v536, %v556
  %v561 = vadd.f32 %v537, %v557
  %v562 = vadd.f32 %v538, %v558
  %v563 = vperm.slane %v519, 1
  %v564 = vperm.slane %v520, 1
  %v565 = vmul.f32 %v549, %v563
  %v566 = vmul.f32 %v550, %v564
  %v567 = vmul.f32 %v551, %v563
  %v568 = vmul.f32 %v552, %v564
  %v569 = vadd.f32 %v545, %v565
  %v570 = vadd.f32 %v546, %v566
  %v571 = vadd.f32 %v547, %v567
  %v572 = vadd.f32 %v548, %v568
  %v573 = vld [vmem:[%s3 + $0x20] sm:$0xff]
  %v574 = vld [vmem:[%s3 + $0x28] sm:$0xff]
  %v575 = vld [vmem:[%s3 + $0x120] sm:$0x3]
  %v576 = vld [vmem:[%s3 + $0x128] sm:$0x3]
  %v577 = vperm.slane %v517, 2
  %v578 = vperm.slane %v518, 2
  %v579 = vmul.f32 %v573, %v577
  %v580 = vmul.f32 %v574, %v578
  %v581 = vmul.f32 %v575, %v577
  %v582 = vmul.f32 %v576, %v578
  %v583 = vadd.f32 %v559, %v579
  %v584 = vadd.f32 %v560, %v580
  %v585 = vadd.f32 %v561, %v581
  %v586 = vadd.f32 %v562, %v582
  %v587 = vperm.slane %v519, 2
  %v588 = vperm.slane %v520, 2
  %v589 = vmul.f32 %v573, %v587
  %v590 = vmul.f32 %v574, %v588
  %v591 = vmul.f32 %v575, %v587
  %v592 = vmul.f32 %v576, %v588
  %v593 = vadd.f32 %v569, %v589
  %v594 = vadd.f32 %v570, %v590
  %v595 = vadd.f32 %v571, %v591
  %v596 = vadd.f32 %v572, %v592
  %v597 = vld [vmem:[%s3 + $0x30] sm:$0xff]
  %v598 = vld [vmem:[%s3 + $0x38] sm:$0xff]
  %v599 = vld [vmem:[%s3 + $0x130] sm:$0x3]
  %v600 = vld [vmem:[%s3 + $0x138] sm:$0x3]
  %v601 = vperm.slane %v517, 3
  %v602 = vperm.slane %v518, 3
  %v603 = vmul.f32 %v597, %v601
  %v604 = vmul.f32 %v598, %v602
  %v605 = vmul.f32 %v599, %v601
  %v606 = vmul.f32 %v600, %v602
  %v607 = vadd.f32 %v583, %v603
  %v608 = vadd.f32 %v584, %v604
  %v609 = vadd.f32 %v585, %v605
  %v610 = vadd.f32 %v586, %v606
  %v611 = vperm.slane %v519, 3
  %v612 = vperm.slane %v520, 3
  %v613 = vmul.f32 %v597, %v611
  %v614 = vmul.f32 %v598, %v612
  %v615 = vmul.f32 %v599, %v611
  %v616 = vmul.f32 %v600, %v612
  %v617 = vadd.f32 %v593, %v613
  %v618 = vadd.f32 %v594, %v614
  %v619 = vadd.f32 %v595, %v615
  %v620 = vadd.f32 %v596, %v616
  %v621 = vld [vmem:[%s3 + $0x40] sm:$0xff]
  %v622 = vld [vmem:[%s3 + $0x48] sm:$0xff]
  %v623 = vld [vmem:[%s3 + $0x140] sm:$0x3]
  %v624 = vld [vmem:[%s3 + $0x148] sm:$0x3]
  %v625 = vperm.slane %v517, 4
  %v626 = vperm.slane %v518, 4
  %v627 = vmul.f32 %v621, %v625
  %v628 = vmul.f32 %v622, %v626
  %v629 = vmul.f32 %v623, %v625
  %v630 = vmul.f32 %v624, %v626
  %v631 = vadd.f32 %v607, %v627
  %v632 = vadd.f32 %v608, %v628
  %v633 = vadd.f32 %v609, %v629
  %v634 = vadd.f32 %v610, %v630
  %v635 = vperm.slane %v519, 4
  %v636 = vperm.slane %v520, 4
  %v637 = vmul.f32 %v621, %v635
  %v638 = vmul.f32 %v622, %v636
  %v639 = vmul.f32 %v623, %v635
  %v640 = vmul.f32 %v624, %v636
  %v641 = vadd.f32 %v617, %v637
  %v642 = vadd.f32 %v618, %v638
  %v643 = vadd.f32 %v619, %v639
  %v644 = vadd.f32 %v620, %v640
  %v645 = vld [vmem:[%s3 + $0x50] sm:$0xff]
  %v646 = vld [vmem:[%s3 + $0x58] sm:$0xff]
  %v647 = vld [vmem:[%s3 + $0x150] sm:$0x3]
  %v648 = vld [vmem:[%s3 + $0x158] sm:$0x3]
  %v649 = vperm.slane %v517, 5
  %v650 = vperm.slane %v518, 5
  %v651 = vmul.f32 %v645, %v649
  %v652 = vmul.f32 %v646, %v650
  %v653 = vmul.f32 %v647, %v649
  %v654 = vmul.f32 %v648, %v650
  %v655 = vadd.f32 %v631, %v651
  %v656 = vadd.f32 %v632, %v652
  %v657 = vadd.f32 %v633, %v653
  %v658 = vadd.f32 %v634, %v654
  %v659 = vperm.slane %v519, 5
  %v660 = vperm.slane %v520, 5
  %v661 = vmul.f32 %v645, %v659
  %v662 = vmul.f32 %v646, %v660
  %v663 = vmul.f32 %v647, %v659
  %v664 = vmul.f32 %v648, %v660
  %v665 = vadd.f32 %v641, %v661
  %v666 = vadd.f32 %v642, %v662
  %v667 = vadd.f32 %v643, %v663
  %v668 = vadd.f32 %v644, %v664
  %v669 = vld [vmem:[%s3 + $0x60] sm:$0xff]
  %v670 = vld [vmem:[%s3 + $0x68] sm:$0xff]
  %v671 = vld [vmem:[%s3 + $0x160] sm:$0x3]
  %v672 = vld [vmem:[%s3 + $0x168] sm:$0x3]
  %v673 = vperm.slane %v517, 6
  %v674 = vperm.slane %v518, 6
  %v675 = vmul.f32 %v669, %v673
  %v676 = vmul.f32 %v670, %v674
  %v677 = vmul.f32 %v671, %v673
  %v678 = vmul.f32 %v672, %v674
  %v679 = vadd.f32 %v655, %v675
  %v680 = vadd.f32 %v656, %v676
  %v681 = vadd.f32 %v657, %v677
  %v682 = vadd.f32 %v658, %v678
  %v683 = vperm.slane %v519, 6
  %v684 = vperm.slane %v520, 6
  %v685 = vmul.f32 %v669, %v683
  %v686 = vmul.f32 %v670, %v684
  %v687 = vmul.f32 %v671, %v683
  %v688 = vmul.f32 %v672, %v684
  %v689 = vadd.f32 %v665, %v685
  %v690 = vadd.f32 %v666, %v686
  %v691 = vadd.f32 %v667, %v687
  %v692 = vadd.f32 %v668, %v688
  %v693 = vld [vmem:[%s3 + $0x70] sm:$0xff]
  %v694 = vld [vmem:[%s3 + $0x78] sm:$0xff]
  %v695 = vld [vmem:[%s3 + $0x170] sm:$0x3]
  %v696 = vld [vmem:[%s3 + $0x178] sm:$0x3]
  %v697 = vperm.slane %v517, 7
  %v698 = vperm.slane %v518, 7
  %v699 = vmul.f32 %v693, %v697
  %v700 = vmul.f32 %v694, %v698
  %v701 = vmul.f32 %v695, %v697
  %v702 = vmul.f32 %v696, %v698
  %v703 = vadd.f32 %v679, %v699
  %v704 = vadd.f32 %v680, %v700
  %v705 = vadd.f32 %v681, %v701
  %v706 = vadd.f32 %v682, %v702
  %v707 = vperm.slane %v519, 7
  %v708 = vperm.slane %v520, 7
  %v709 = vmul.f32 %v693, %v707
  %v710 = vmul.f32 %v694, %v708
  %v711 = vmul.f32 %v695, %v707
  %v712 = vmul.f32 %v696, %v708
  %v713 = vadd.f32 %v689, %v709
  %v714 = vadd.f32 %v690, %v710
  %v715 = vadd.f32 %v691, %v711
  %v716 = vadd.f32 %v692, %v712
  %v717 = vld [vmem:[%s3 + $0x80] sm:$0xff]
  %v718 = vld [vmem:[%s3 + $0x88] sm:$0xff]
  %v719 = vld [vmem:[%s3 + $0x180] sm:$0x3]
  %v720 = vld [vmem:[%s3 + $0x188] sm:$0x3]
  %v721 = vperm.slane %v521, 0
  %v722 = vperm.slane %v522, 0
  %v723 = vmul.f32 %v717, %v721
  %v724 = vmul.f32 %v718, %v722
  %v725 = vmul.f32 %v719, %v721
  %v726 = vmul.f32 %v720, %v722
  %v727 = vadd.f32 %v703, %v723
  %v728 = vadd.f32 %v704, %v724
  %v729 = vadd.f32 %v705, %v725
  %v730 = vadd.f32 %v706, %v726
  %v731 = vperm.slane %v523, 0
  %v732 = vperm.slane %v524, 0
  %v733 = vmul.f32 %v717, %v731
  %v734 = vmul.f32 %v718, %v732
  %v735 = vmul.f32 %v719, %v731
  %v736 = vmul.f32 %v720, %v732
  %v737 = vadd.f32 %v713, %v733
  %v738 = vadd.f32 %v714, %v734
  %v739 = vadd.f32 %v715, %v735
  %v740 = vadd.f32 %v716, %v736
  %v741 = vld [vmem:[%s3 + $0x90] sm:$0xff]
  %v742 = vld [vmem:[%s3 + $0x98] sm:$0xff]
  %v743 = vld [vmem:[%s3 + $0x190] sm:$0x3]
  %v744 = vld [vmem:[%s3 + $0x198] sm:$0x3]
  %v745 = vperm.slane %v521, 1
  %v746 = vperm.slane %v522, 1
  %v747 = vmul.f32 %v741, %v745
  %v748 = vmul.f32 %v742, %v746
  %v749 = vmul.f32 %v743, %v745
  %v750 = vmul.f32 %v744, %v746
  %v751 = vadd.f32 %v727, %v747
  %v752 = vadd.f32 %v728, %v748
  %v753 = vadd.f32 %v729, %v749
  %v754 = vadd.f32 %v730, %v750
  %v755 = vperm.slane %v523, 1
  %v756 = vperm.slane %v524, 1
  %v757 = vmul.f32 %v741, %v755
  %v758 = vmul.f32 %v742, %v756
  %v759 = vmul.f32 %v743, %v755
  %v760 = vmul.f32 %v744, %v756
  %v761 = vadd.f32 %v737, %v757
  %v762 = vadd.f32 %v738, %v758
  %v763 = vadd.f32 %v739, %v759
  %v764 = vadd.f32 %v740, %v760
  %v765 = vld [vmem:[%s3 + $0xa0] sm:$0xff]
  %v766 = vld [vmem:[%s3 + $0xa8] sm:$0xff]
  %v767 = vld [vmem:[%s3 + $0x1a0] sm:$0x3]
  %v768 = vld [vmem:[%s3 + $0x1a8] sm:$0x3]
  %v769 = vperm.slane %v521, 2
  %v770 = vperm.slane %v522, 2
  %v771 = vmul.f32 %v765, %v769
  %v772 = vmul.f32 %v766, %v770
  %v773 = vmul.f32 %v767, %v769
  %v774 = vmul.f32 %v768, %v770
  %v775 = vadd.f32 %v751, %v771
  %v776 = vadd.f32 %v752, %v772
  %v777 = vadd.f32 %v753, %v773
  %v778 = vadd.f32 %v754, %v774
  %v779 = vperm.slane %v523, 2
  %v780 = vperm.slane %v524, 2
  %v781 = vmul.f32 %v765, %v779
  %v782 = vmul.f32 %v766, %v780
  %v783 = vmul.f32 %v767, %v779
  %v784 = vmul.f32 %v768, %v780
  %v785 = vadd.f32 %v761, %v781
  %v786 = vadd.f32 %v762, %v782
  %v787 = vadd.f32 %v763, %v783
  %v788 = vadd.f32 %v764, %v784
  %v789 = vld [vmem:[%s3 + $0xb0] sm:$0xff]
  %v790 = vld [vmem:[%s3 + $0xb8] sm:$0xff]
  %v791 = vld [vmem:[%s3 + $0x1b0] sm:$0x3]
  %v792 = vld [vmem:[%s3 + $0x1b8] sm:$0x3]
  %v793 = vperm.slane %v521, 3
  %v794 = vperm.slane %v522, 3
  %v795 = vmul.f32 %v789, %v793
  %v796 = vmul.f32 %v790, %v794
  %v797 = vmul.f32 %v791, %v793
  %v798 = vmul.f32 %v792, %v794
  %v799 = vadd.f32 %v775, %v795
  %v800 = vadd.f32 %v776, %v796
  %v801 = vadd.f32 %v777, %v797
  %v802 = vadd.f32 %v778, %v798
  %v803 = vperm.slane %v523, 3
  %v804 = vperm.slane %v524, 3
  %v805 = vmul.f32 %v789, %v803
  %v806 = vmul.f32 %v790, %v804
  %v807 = vmul.f32 %v791, %v803
  %v808 = vmul.f32 %v792, %v804
  %v809 = vadd.f32 %v785, %v805
  %v810 = vadd.f32 %v786, %v806
  %v811 = vadd.f32 %v787, %v807
  %v812 = vadd.f32 %v788, %v808
  %v813 = vld [vmem:[%s3 + $0xc0] sm:$0xff]
  %v814 = vld [vmem:[%s3 + $0xc8] sm:$0xff]
  %v815 = vld [vmem:[%s3 + $0x1c0] sm:$0x3]
  %v816 = vld [vmem:[%s3 + $0x1c8] sm:$0x3]
  %v817 = vperm.slane %v521, 4
  %v818 = vperm.slane %v522, 4
  %v819 = vmul.f32 %v813, %v817
  %v820 = vmul.f32 %v814, %v818
  %v821 = vmul.f32 %v815, %v817
  %v822 = vmul.f32 %v816, %v818
  %v823 = vadd.f32 %v799, %v819
  %v824 = vadd.f32 %v800, %v820
  %v825 = vadd.f32 %v801, %v821
  %v826 = vadd.f32 %v802, %v822
  %v827 = vperm.slane %v523, 4
  %v828 = vperm.slane %v524, 4
  %v829 = vmul.f32 %v813, %v827
  %v830 = vmul.f32 %v814, %v828
  %v831 = vmul.f32 %v815, %v827
  %v832 = vmul.f32 %v816, %v828
  %v833 = vadd.f32 %v809, %v829
  %v834 = vadd.f32 %v810, %v830
  %v835 = vadd.f32 %v811, %v831
  %v836 = vadd.f32 %v812, %v832
  %v837 = vld [vmem:[%s3 + $0xd0] sm:$0xff]
  %v838 = vld [vmem:[%s3 + $0xd8] sm:$0xff]
  %v839 = vld [vmem:[%s3 + $0x1d0] sm:$0x3]
  %v840 = vld [vmem:[%s3 + $0x1d8] sm:$0x3]
  %v841 = vperm.slane %v521, 5
  %v842 = vperm.slane %v522, 5
  %v843 = vmul.f32 %v837, %v841
  %v844 = vmul.f32 %v838, %v842
  %v845 = vmul.f32 %v839, %v841
  %v846 = vmul.f32 %v840, %v842
  %v847 = vadd.f32 %v823, %v843
  %v848 = vadd.f32 %v824, %v844
  %v849 = vadd.f32 %v825, %v845
  %v850 = vadd.f32 %v826, %v846
  %v851 = vperm.slane %v523, 5
  %v852 = vperm.slane %v524, 5
  %v853 = vmul.f32 %v837, %v851
  %v854 = vmul.f32 %v838, %v852
  %v855 = vmul.f32 %v839, %v851
  %v856 = vmul.f32 %v840, %v852
  %v857 = vadd.f32 %v833, %v853
  %v858 = vadd.f32 %v834, %v854
  %v859 = vadd.f32 %v835, %v855
  %v860 = vadd.f32 %v836, %v856
  %v861 = vld [vmem:[%s3 + $0xe0] sm:$0xff]
  %v862 = vld [vmem:[%s3 + $0xe8] sm:$0xff]
  %v863 = vld [vmem:[%s3 + $0x1e0] sm:$0x3]
  %v864 = vld [vmem:[%s3 + $0x1e8] sm:$0x3]
  %v865 = vperm.slane %v521, 6
  %v866 = vperm.slane %v522, 6
  %v867 = vmul.f32 %v861, %v865
  %v868 = vmul.f32 %v862, %v866
  %v869 = vmul.f32 %v863, %v865
  %v870 = vmul.f32 %v864, %v866
  %v871 = vadd.f32 %v847, %v867
  %v872 = vadd.f32 %v848, %v868
  %v873 = vadd.f32 %v849, %v869
  %v874 = vadd.f32 %v850, %v870
  %v875 = vperm.slane %v523, 6
  %v876 = vperm.slane %v524, 6
  %v877 = vmul.f32 %v861, %v875
  %v878 = vmul.f32 %v862, %v876
  %v879 = vmul.f32 %v863, %v875
  %v880 = vmul.f32 %v864, %v876
  %v881 = vadd.f32 %v857, %v877
  %v882 = vadd.f32 %v858, %v878
  %v883 = vadd.f32 %v859, %v879
  %v884 = vadd.f32 %v860, %v880
  %v885 = vld [vmem:[%s3 + $0xf0] sm:$0xff]
  %v886 = vld [vmem:[%s3 + $0xf8] sm:$0xff]
  %v887 = vld [vmem:[%s3 + $0x1f0] sm:$0x3]
  %v888 = vld [vmem:[%s3 + $0x1f8] sm:$0x3]
  %v889 = vperm.slane %v521, 7
  %v890 = vperm.slane %v522, 7
  %v891 = vmul.f32 %v885, %v889
  %v892 = vmul.f32 %v886, %v890
  %v893 = vmul.f32 %v887, %v889
  %v894 = vmul.f32 %v888, %v890
  %v895 = vadd.f32 %v871, %v891
  %v896 = vadd.f32 %v872, %v892
  %v897 = vadd.f32 %v873, %v893
  %v898 = vadd.f32 %v874, %v894
  %v899 = vperm.slane %v523, 7
  %v900 = vperm.slane %v524, 7
  %v901 = vmul.f32 %v885, %v899
  %v902 = vmul.f32 %v886, %v900
  %v903 = vmul.f32 %v887, %v899
  %v904 = vmul.f32 %v888, %v900
  %v905 = vadd.f32 %v881, %v901
  %v906 = vadd.f32 %v882, %v902
  %v907 = vadd.f32 %v883, %v903
  %v908 = vadd.f32 %v884, %v904
  %v909 = vlaneseq
  %v910 = vand.u32 %v909, 127
  %vm911 = vcmp.eq.s32.totalorder %v910, 0
  %v912 = vadd.f32 %v895, %v896
  %913 = vadd.xlane.f32.xlu0 %v912
  %v914 = vpop.xlane.xlu0 %913
  %vm915 = vcmask 1041408
  %v916 = vsel %vm915, %v897, 0.0
  %v917 = vsel %vm915, %v898, 0.0
  %v918 = vadd.f32 %v916, %v917
  %919 = vadd.xlane.f32.xlu0 %v918
  %v920 = vpop.xlane.xlu0 %919
  %v921 = vsel %vm911, %v914, 0.0
  %v922 = vsel %vm911, %v920, 0.0
  %v923 = vadd.f32 %v921, 0.0
  %v924 = vadd.f32 %v922, 0.0
  %vm925 = vcmp.eq.s32.totalorder %v910, 1
  %v926 = vadd.f32 %v905, %v906
  %927 = vadd.xlane.f32.xlu0 %v926
  %v928 = vpop.xlane.xlu0 %927
  %v929 = vsel %vm915, %v907, 0.0
  %v930 = vsel %vm915, %v908, 0.0
  %v931 = vadd.f32 %v929, %v930
  %932 = vadd.xlane.f32.xlu0 %v931
  %v933 = vpop.xlane.xlu0 %932
  %v934 = vsel %vm925, %v928, 0.0
  %v935 = vsel %vm925, %v933, 0.0
  %v936 = vadd.f32 %v923, %v934
  %v937 = vadd.f32 %v924, %v935
  %v938 = vld [vmem:[%s4] sm:$0xff]
  %v939 = vld [vmem:[%s4 + $0x8] sm:$0x3]
  %941 = vset.pattern.permute.xlu0 0
  %942 = vperm.xlu0 %941, %v938
  %v943 = vpop.permute.xlu0 %942
  %946 = vset.pattern.permute.xlu0 0
  %947 = vperm.xlu0 %946, %v939
  %v948 = vpop.permute.xlu0 %947
  %v950 = vadd.f32 %v936, %v943
  %v951 = vadd.f32 %v937, %v948
  %vm952 = vcmask 15360
  %953 = vst.msk [vmem:[%s5] sm:$0xff] %vm952, %v950
  %vm954 = vcmask 9216
  %955 = vst.msk [vmem:[%s5 + $0x8] sm:$0x3] %vm954, %v951
  // Predicated region
  $region22: #{mnist_cnn_forward.1} parent=0 // pred_check
    _
  $region23: #{mnist_cnn_forward.1} parent=0 // pred_check_branch
    %957 = sbr.rel (0) target = $region25
  $region24: #{mnist_cnn_forward.1} parent=0 // pred_region
    _
  $region25: #{mnist_cnn_forward.1} parent=0 // pred_fallthru
    _
  // Predicated region
  $region26: #{mnist_cnn_forward.1} parent=0 // pred_check
    _
  $region27: #{mnist_cnn_forward.1} parent=0 // pred_check_branch
    %959 = sbr.rel (0) target = $region29
  $region28: #{mnist_cnn_forward.1} parent=0 // pred_region
    _
  $region29: #{mnist_cnn_forward.1} parent=0 // pred_fallthru
    _

</llo_original>
